<compile_context>
chip_gen: v5e
topology: v5e:2x2
jax: 0.10.0
libtpu: 0.0.40
codegen_flags: <defaults>
</compile_context>

<pallas_src>
import functools
import itertools
import numpy as np

import jax
import jax.numpy as jnp
from jax.experimental import pallas as pl
from jax.experimental.pallas import tpu as pltpu

BN_EPS = 1e-5
# BatchNorm (eval mode, default running stats mean=0 / var=1, weight=1, bias=0)
# folds to a single multiplicative constant on the weights (per-channel in general).
BN_SCALE = float(1.0 / np.sqrt(1.0 + BN_EPS))
NUM_GROUPS = 40

_VMEM_LIMIT = 48 * 1024 * 1024  # explicit VMEM budget (fits v7x's 64 MiB physical)


def _round_up(x, m):
    return (int(x) + m - 1) // m * m


# ----------------------------------------------------------------------------
# Pallas kernels
# ----------------------------------------------------------------------------
def _conv_kernel(x_ref, w_ref, b_ref, o_ref, *, taps, relu, vpu):
    """In-kernel im2col convolution.

    x_ref: (P, Cin, Lp)  bf16  -- flattened (phase-decomposed) padded activation.
    w_ref: (T, Cout, Cin) bf16 (or (T, Cin, 1) when vpu) -- BN scale pre-folded.
    b_ref: (Cout, 1) f32       -- per-channel bias (BN beta fold target).
    o_ref: (Cout, M_pad) f32   -- lane-dense output (spatial on lanes).
    """
    m_pad = o_ref.shape[-1]
    acc = None
    for t, (p, off) in enumerate(taps):
        a = x_ref[p, :, pl.ds(off, m_pad)]              # (Cin, M_pad) bf16, static slice
        if vpu:                                         # Cout == 1: VPU weighted sum
            w_col = w_ref[t].astype(jnp.float32)        # (Cin, 1)
            c = jnp.sum(a.astype(jnp.float32) * w_col, axis=0, keepdims=True)
        else:                                           # MXU: (Cout,Cin) @ (Cin,M_pad)
            c = jnp.dot(w_ref[t], a, preferred_element_type=jnp.float32)
        acc = c if acc is None else acc + c
    acc = acc + b_ref[...]
    if relu:
        acc = jnp.maximum(acc, 0.0)
    o_ref[...] = acc


def _gwc_kernel(fl_ref, frp_ref, o_ref, *, dmax, width):
    """Group-wise correlation volume; fr padded once along W, per-d static window."""
    fl = fl_ref[...]                                    # (G, Cg, H, W)
    frp = frp_ref[...]                                  # (G, Cg, H, W + dmax - 1)
    for d in range(dmax):
        lo = (dmax - 1) - d
        win = jax.lax.slice_in_dim(frp, lo, lo + width, axis=3)   # (G, Cg, H, W)
        o_ref[d] = jnp.mean(fl * win, axis=1)           # (G, H, W)


def _softmax_reg_kernel(x_ref, o_ref):
    x = x_ref[...]                                      # (D, TL)
    m = jnp.max(x, axis=0, keepdims=True)
    e = jnp.exp(x - m)
    inv = pl.reciprocal(jnp.sum(e, axis=0, keepdims=True), approx=True)
    p = e * inv
    d = jax.lax.broadcasted_iota(jnp.float32, x.shape, 0)
    o_ref[...] = jnp.sum(p * d, axis=0, keepdims=True)  # (1, TL)


def _prop_kernel(mask_ref, dun_ref, o_ref):
    m = mask_ref[...]                                   # (9, 16, TL)
    dv = dun_ref[...]                                   # (9, 1, TL)
    mx = jnp.max(m, axis=0, keepdims=True)
    e = jnp.exp(m - mx)
    inv = pl.reciprocal(jnp.sum(e, axis=0, keepdims=True), approx=True)
    o_ref[...] = jnp.sum(e * inv * dv, axis=0)          # (16, TL)


# ----------------------------------------------------------------------------
# Convolution wrapper: no HBM im2col, lane-dense output, bf16 MXU operands
# ----------------------------------------------------------------------------
def _conv_prep(x, k, stride, pad, dil):
    """x: (Cin, *spatial) -> (phases (P,Cin,Lp) bf16, taps, (O, Q, M, M_pad)).

    Space-to-depth handles stride>1; the per-phase spatial extent is flattened so
    every conv tap becomes a contiguous slice at a STATIC element offset.
    """
    cin = x.shape[0]
    S = tuple(x.shape[1:])
    n = len(S)
    O = tuple((S[i] + 2 * pad - dil * (k - 1) - 1) // stride + 1 for i in range(n))
    Pdim = tuple(S[i] + 2 * pad for i in range(n))
    Pc = tuple(_round_up(Pdim[i], stride) for i in range(n))
    pad_cfg = [(0, 0)] + [(pad, Pc[i] - S[i] - pad) for i in range(n)]
    xp = jnp.pad(x, pad_cfg)
    Q = tuple(Pc[i] // stride for i in range(n))
    if stride == 1:
        ph = xp[None]                                   # (1, Cin, *Q)
    else:
        shp = [cin]
        for i in range(n):
            shp += [Q[i], stride]
        xr = xp.reshape(shp)
        perm = [2 * i + 2 for i in range(n)] + [0] + [2 * i + 1 for i in range(n)]
        ph = xr.transpose(perm).reshape((stride ** n, cin) + Q)
    Lq = int(np.prod(Q))
    ph = ph.reshape(ph.shape[0], cin, Lq)
    # row-major strides of the per-phase spatial extent
    st = [1] * n
    for i in range(n - 2, -1, -1):
        st[i] = st[i + 1] * Q[i + 1]
    taps = []
    for tmi in itertools.product(range(k), repeat=n):
        phase, off = 0, 0
        for i in range(n):
            ti = tmi[i] * dil
            phase = phase * stride + (ti % stride)
            off += (ti // stride) * st[i]
        taps.append((phase, off))
    M = O[0] * st[0]
    M_pad = _round_up(M, 128)                           # lane-dense output stores
    max_off = max(off for _, off in taps)
    Lp = _round_up(max(Lq, max_off + M_pad), 128)
    ph = jnp.pad(ph, ((0, 0), (0, 0), (0, Lp - Lq))).astype(jnp.bfloat16)
    return ph, tuple(taps), (O, Q, M, M_pad)


@functools.partial(jax.jit, static_argnames=("stride", "pad", "dil", "bn", "relu"))
def _conv_nd(x, w, *, stride, pad, dil, bn, relu):
    """x: (Cin, *spatial), w: (Cout, Cin, k, ..., k) -> (Cout, *out_spatial)."""
    cout, cin = int(w.shape[0]), int(w.shape[1])
    k = int(w.shape[2])
    n = x.ndim - 1
    ph, taps, (O, Q, M, M_pad) = _conv_prep(x, k, stride, pad, dil)

    scale = BN_SCALE if bn else 1.0                     # fold BN scale into weights
    wk = (w * scale).reshape(cout, cin, k ** n)
    vpu = (cout == 1)
    if vpu:
        wk = wk.transpose(2, 1, 0).astype(jnp.bfloat16)  # (T, Cin, 1)
    else:
        wk = wk.transpose(2, 0, 1).astype(jnp.bfloat16)  # (T, Cout, Cin)
    bias = jnp.zeros((cout, 1), jnp.float32)            # BN beta / conv bias fold target

    kern = functools.partial(_conv_kernel, taps=taps, relu=relu, vpu=vpu)
    out = pl.pallas_call(
        kern,
        out_shape=jax.ShapeDtypeStruct((cout, M_pad), jnp.float32),
        compiler_params=pltpu.CompilerParams(vmem_limit_bytes=_VMEM_LIMIT),
    )(ph, wk, bias)

    out = out[:, :M].reshape((cout, O[0]) + Q[1:])
    idx = (slice(None), slice(None)) + tuple(slice(0, O[i]) for i in range(1, n))
    return out[idx]


def conv2d(x, w, *, stride=1, pad=1, dil=1, bn=True, relu=False):
    return _conv_nd(x, w, stride=stride, pad=pad, dil=dil, bn=bn, relu=relu)


def conv3d(x, w, *, stride=1, pad=1, bn=True, relu=False):
    return _conv_nd(x, w, stride=stride, pad=pad, dil=1, bn=bn, relu=relu)


# ----------------------------------------------------------------------------
# Cost-volume / regression / propagation wrappers
# ----------------------------------------------------------------------------
@functools.partial(jax.jit, static_argnames=("maxdisp", "num_groups"))
def build_gwc_volume(fl, fr, *, maxdisp, num_groups):
    """fl, fr: (C,H,W) -> (num_groups, maxdisp, H, W) group-wise correlation."""
    C, H, W = fl.shape
    Cg = C // num_groups
    fl_g = fl.reshape(num_groups, Cg, H, W)
    fr_g = fr.reshape(num_groups, Cg, H, W)
    frp = jnp.pad(fr_g, ((0, 0), (0, 0), (0, 0), (maxdisp - 1, 0)))   # single 1x pad
    kern = functools.partial(_gwc_kernel, dmax=maxdisp, width=W)
    out = pl.pallas_call(
        kern,
        out_shape=jax.ShapeDtypeStruct((maxdisp, num_groups, H, W), jnp.float32),
        compiler_params=pltpu.CompilerParams(vmem_limit_bytes=_VMEM_LIMIT),
    )(fl_g, frp)
    return out.transpose(1, 0, 2, 3)                    # (G, D, H, W)


@functools.partial(jax.jit, static_argnums=(2,))
def build_concat_volume(fl, fr, maxdisp):
    """fl, fr: (C,H,W) -> (2C, maxdisp, H, W) (host-side glue, no compute)."""
    C, H, W = fl.shape
    wl = jnp.arange(W)
    parts_l = [jnp.where(wl >= d, fl, 0.0) for d in range(maxdisp)]
    parts_r = [fr if d == 0 else jnp.pad(fr[:, :, :W - d], ((0, 0), (0, 0), (d, 0)))
               for d in range(maxdisp)]
    return jnp.concatenate([jnp.stack(parts_l, 1), jnp.stack(parts_r, 1)], axis=0)


def _pick_lane_tile(n):
    for t in (512, 256, 128):
        if n % t == 0:
            return t
    return n


@jax.jit
def disparity_regression_softmax(cost):
    """cost: (D,H,W) -> (1,H,W): softmax over D then sum_d d*p."""
    D, H, W = cost.shape
    HW = H * W
    TL = _pick_lane_tile(HW)
    out = pl.pallas_call(
        _softmax_reg_kernel,
        out_shape=jax.ShapeDtypeStruct((1, HW), jnp.float32),
        grid=(HW // TL,),
        in_specs=[pl.BlockSpec((D, TL), lambda i: (0, i))],
        out_specs=pl.BlockSpec((1, TL), lambda i: (0, i)),
        compiler_params=pltpu.CompilerParams(dimension_semantics=("parallel",)),
    )(cost.reshape(D, HW))
    return out.reshape(1, H, W)


@jax.jit
def prop_combine(mask, dun):
    """mask: (144,H,W) 9x4x4 logits, dun: (9,H,W) unfolded 4*disp -> (1,4H,4W)."""
    _, H, W = dun.shape
    HW = H * W
    TL = _pick_lane_tile(HW)
    up = pl.pallas_call(
        _prop_kernel,
        out_shape=jax.ShapeDtypeStruct((16, HW), jnp.float32),
        grid=(HW // TL,),
        in_specs=[pl.BlockSpec((9, 16, TL), lambda i: (0, 0, i)),
                  pl.BlockSpec((9, 1, TL), lambda i: (0, 0, i))],
        out_specs=pl.BlockSpec((16, TL), lambda i: (0, i)),
        compiler_params=pltpu.CompilerParams(dimension_semantics=("parallel",)),
    )(mask.reshape(9, 16, HW), dun.reshape(9, 1, HW))
    # (4a,4b,h,w) -> permute(0,1,4,2,5,3)/reshape of the PyTorch code
    up = up.reshape(4, 4, H, W).transpose(2, 0, 3, 1).reshape(4 * H, 4 * W)
    return up[None]


# ----------------------------------------------------------------------------
# Parameter construction (deterministic synthetic init, mirrors __init__ shapes)
# ----------------------------------------------------------------------------
class Init:
    def __init__(self, seed=0):
        self.key = jax.random.PRNGKey(seed)

    def _next(self):
        self.key, sub = jax.random.split(self.key)
        return sub

    def conv2d(self, cin, cout, k):
        std = float(np.sqrt(2.0 / (k * k * cout)))
        return std * jax.random.normal(self._next(), (cout, cin, k, k), jnp.float32)

    def conv3d(self, cin, cout, k):
        std = float(np.sqrt(2.0 / (k * k * k * cout)))
        return std * jax.random.normal(self._next(), (cout, cin, k, k, k), jnp.float32)


def make_feature_params(init):
    p = {}
    p['firstconv'] = [init.conv2d(3, 32, 3), init.conv2d(32, 32, 3), init.conv2d(32, 32, 3)]

    def make_layer(inplanes, planes, blocks, stride):
        layer = []
        for bi in range(blocks):
            blk = {'conv1': init.conv2d(inplanes if bi == 0 else planes, planes, 3),
                   'conv2': init.conv2d(planes, planes, 3)}
            if bi == 0 and (stride != 1 or inplanes != planes):
                blk['down'] = init.conv2d(inplanes, planes, 1)
            layer.append(blk)
        return layer

    p['layer1'] = make_layer(32, 32, 3, 1)
    p['layer2'] = make_layer(32, 64, 16, 2)
    p['layer3'] = make_layer(64, 128, 3, 1)
    p['layer4'] = make_layer(128, 128, 3, 1)          # dilation=2 applied in forward
    p['lastconv'] = [init.conv2d(320, 128, 3), init.conv2d(128, 12, 1)]
    return p


def make_params(seed=0):
    init = Init(seed)
    P = {}
    P['feat'] = make_feature_params(init)
    # TODO(synk): Guidance(64) source not provided -- deterministic stand-in producing 'g' (64ch @ 1/4 res).
    P['guid'] = [init.conv2d(3, 32, 3), init.conv2d(32, 64, 3)]
    P['dres0'] = [init.conv3d(NUM_GROUPS + 2 * 12, 32, 3), init.conv3d(32, 32, 3)]
    P['dres1'] = [init.conv3d(32, 32, 3), init.conv3d(32, 32, 3)]
    # TODO(synk): cva(maxdisp, 32, downsample=True) source not provided -- shape-consistent stand-in.
    for name in ('cva1', 'cva2', 'cva3'):
        P[name] = {'prob': init.conv3d(32, 1, 3), 'agg': init.conv3d(32, 32, 3)}
    P['classif3'] = [init.conv3d(32, 32, 3), init.conv3d(32, 1, 3)]
    # classif0/1/2 are only used on the training branch (not exercised in eval mode).
    P['prop'] = [init.conv2d(64, 2 * 64, 3), init.conv2d(2 * 64, 9 * 16, 3)]
    return P


# ----------------------------------------------------------------------------
# Module forwards
# ----------------------------------------------------------------------------
def basic_block(x, blk, stride, pad, dil):
    padding = dil if dil > 1 else pad
    out = conv2d(x, blk['conv1'], stride=stride, pad=padding, dil=dil, bn=True, relu=True)
    out = conv2d(out, blk['conv2'], stride=1, pad=padding, dil=dil, bn=True, relu=False)
    if 'down' in blk:
        x = conv2d(x, blk['down'], stride=stride, pad=0, dil=1, bn=True, relu=False)
    return out + x


def run_layer(x, layer, stride, pad, dil):
    for bi, blk in enumerate(layer):
        x = basic_block(x, blk, stride if bi == 0 else 1, pad, dil)
    return x


def feature_extraction_fwd(P, x):
    x = conv2d(x, P['firstconv'][0], stride=2, pad=1, dil=1, bn=True, relu=True)
    x = conv2d(x, P['firstconv'][1], stride=1, pad=1, dil=1, bn=True, relu=True)
    x = conv2d(x, P['firstconv'][2], stride=1, pad=1, dil=1, bn=True, relu=True)
    x = run_layer(x, P['layer1'], 1, 1, 1)
    l2 = run_layer(x, P['layer2'], 2, 1, 1)
    l3 = run_layer(l2, P['layer3'], 1, 1, 1)
    l4 = run_layer(l3, P['layer4'], 1, 1, 2)
    gwc = jnp.concatenate([l2, l3, l4], axis=0)          # (320, H/4, W/4)
    cat = conv2d(gwc, P['lastconv'][0], stride=1, pad=1, dil=1, bn=True, relu=True)
    cat = conv2d(cat, P['lastconv'][1], stride=1, pad=0, dil=1, bn=False, relu=False)
    return {'gwc': gwc, 'cat': cat}


def guidance_fwd(Pg, x):
    # TODO(synk): Guidance module definition unavailable; stand-in (two strided convbn+ReLU).
    h = conv2d(x, Pg[0], stride=2, pad=1, dil=1, bn=True, relu=True)
    return conv2d(h, Pg[1], stride=2, pad=1, dil=1, bn=True, relu=True)


def cva_fwd(Pc, cost):
    # TODO(synk): cva module definition unavailable; stand-in returning (prob 1ch @ 1/2 res, 32ch cost).
    prob = conv3d(cost, Pc['prob'], stride=2, pad=1, bn=False, relu=False)
    aug = conv3d(cost, Pc['agg'], stride=1, pad=1, bn=True, relu=False)
    return prob, aug


def propagation_fwd(Pp, g, disp_q):
    """PropgationNet_4x: 9-tap convex upsampling of disp (1,H4,W4) -> (1,4H4,4W4)."""
    m = conv2d(g, Pp[0], stride=1, pad=1, dil=1, bn=True, relu=True)
    m = conv2d(m, Pp[1], stride=1, pad=1, dil=1, bn=False, relu=False)   # (144,H4,W4)
    H4, W4 = disp_q.shape[-2:]
    dp = jnp.pad(4.0 * disp_q, ((0, 0), (1, 1), (1, 1)))
    dun = jnp.stack([dp[0, i:i + H4, j:j + W4] for i in range(3) for j in range(3)], 0)
    return prop_combine(m, dun)


def forward_single(P, left, right, maxdisp):
    fl = feature_extraction_fwd(P['feat'], left)
    fr = feature_extraction_fwd(P['feat'], right)
    g = guidance_fwd(P['guid'], left)

    D4 = maxdisp // 4
    gwc_vol = build_gwc_volume(fl['gwc'], fr['gwc'], maxdisp=D4, num_groups=NUM_GROUPS)
    cat_vol = build_concat_volume(fl['cat'], fr['cat'], D4)
    volume = jnp.concatenate([gwc_vol, cat_vol], axis=0)          # (64, D4, H4, W4)

    c = conv3d(volume, P['dres0'][0], stride=1, pad=1, bn=True, relu=True)
    c = conv3d(c, P['dres0'][1], stride=1, pad=1, bn=True, relu=True)
    d = conv3d(c, P['dres1'][0], stride=1, pad=1, bn=True, relu=True)
    d = conv3d(d, P['dres1'][1], stride=1, pad=1, bn=True, relu=False)
    cost0 = d + c

    _prob1, aug1 = cva_fwd(P['cva1'], cost0)
    out1 = cost0 + aug1
    prob2, out2 = cva_fwd(P['cva2'], out1)
    _prob3, out3 = cva_fwd(P['cva3'], out2)

    o = conv3d(out3, P['classif3'][0], stride=1, pad=1, bn=True, relu=True)
    o = conv3d(o, P['classif3'][1], stride=1, pad=1, bn=False, relu=False)  # (1,D4,H4,W4)
    cost3 = o[0]
    pred4_q = disparity_regression_softmax(cost3)                 # (1, H4, W4)
    pred4 = propagation_fwd(P['prop'], g, pred4_q)                # (1, 4*H4, 4*W4)
    return pred4, prob2[0]                                        # prob_volume2.squeeze(1)


def gwcnet_forward(P, left, right, disp_true, maxdisp):
    """Eval-mode path of GwcNet.forward (self.training == False); disp_true unused."""
    del disp_true
    # TODO(synk): for B>1 fold the batch into the lane (spatial) dim or jax.vmap
    # forward_single; the toy harness uses B=1 so a Python loop is kept.
    preds, probs = [], []
    for b in range(left.shape[0]):
        p4, pv2 = forward_single(P, left[b], right[b], maxdisp)
        preds.append(p4)
        probs.append(pv2)
    return jnp.stack(preds, 0), jnp.stack(probs, 0)


# ----------------------------------------------------------------------------
if __name__ == "__main__":
    MAXDISP = 16
    B, H, W = 1, 32, 32

    key = jax.random.PRNGKey(0)
    k1, k2, k3 = jax.random.split(key, 3)
    left = jax.random.normal(k1, (B, 3, H, W), jnp.float32)
    right = jax.random.normal(k2, (B, 3, H, W), jnp.float32)
    disp_true = jax.random.uniform(k3, (B, H, W), jnp.float32) * MAXDISP  # unused (eval)

    params = make_params(seed=0)
    pred4, prob2 = gwcnet_forward(params, left, right, disp_true, MAXDISP)
    pred4 = jax.block_until_ready(pred4)
    prob2 = jax.block_until_ready(prob2)

    assert pred4.shape == (B, 1, H, W), pred4.shape
    assert prob2.shape == (B, MAXDISP // 8, H // 8, W // 8), prob2.shape
    assert np.all(np.isfinite(np.asarray(pred4)))
    assert np.all(np.isfinite(np.asarray(prob2)))
    print("KERNEL_OK")
</pallas_src>

<mosaic_0001>
module attributes {stable_mosaic.version = 11 : i64} {
  func.func @_conv_kernel(%arg0: memref<4x3x512xbf16, #tpu.memory_space<vmem>>, %arg1: memref<9x32x3xbf16, #tpu.memory_space<vmem>>, %arg2: memref<32x1xf32, #tpu.memory_space<vmem>>, %arg3: memref<32x384xf32, #tpu.memory_space<vmem>>) attributes {dimension_semantics = [], scalar_prefetch = 0 : i64, scratch_operands = 0 : i64, tpu.core_type = #tpu.core_type<tc>} {
    %c0 = arith.constant 0 : index
    %c0_0 = arith.constant 0 : index
    %c0_1 = arith.constant 0 : index
    %0 = vector.load %arg0[%c0, %c0_0, %c0_1] : memref<4x3x512xbf16, #tpu.memory_space<vmem>>, vector<1x3x384xbf16>
    %1 = vector.shape_cast %0 : vector<1x3x384xbf16> to vector<3x384xbf16>
    %c0_2 = arith.constant 0 : index
    %c0_3 = arith.constant 0 : index
    %c0_4 = arith.constant 0 : index
    %2 = vector.load %arg1[%c0_2, %c0_3, %c0_4] : memref<9x32x3xbf16, #tpu.memory_space<vmem>>, vector<1x32x3xbf16>
    %3 = vector.shape_cast %2 : vector<1x32x3xbf16> to vector<32x3xbf16>
    %cst = arith.constant dense<0.000000e+00> : vector<32x384xf32>
    %4 = tpu.matmul %3, %1, %cst {dimension_numbers = #tpu.dot_dimension_numbers<[1], [0], [0], [1], [0, 0, 1, 1], [], []>} : vector<32x3xbf16>, vector<3x384xbf16>, vector<32x384xf32> -> vector<32x384xf32>
    %c1 = arith.constant 1 : index
    %c0_5 = arith.constant 0 : index
    %c0_6 = arith.constant 0 : index
    %5 = vector.load %arg0[%c1, %c0_5, %c0_6] : memref<4x3x512xbf16, #tpu.memory_space<vmem>>, vector<1x3x384xbf16>
    %6 = vector.shape_cast %5 : vector<1x3x384xbf16> to vector<3x384xbf16>
    %c1_7 = arith.constant 1 : index
    %c0_8 = arith.constant 0 : index
    %c0_9 = arith.constant 0 : index
    %7 = vector.load %arg1[%c1_7, %c0_8, %c0_9] : memref<9x32x3xbf16, #tpu.memory_space<vmem>>, vector<1x32x3xbf16>
    %8 = vector.shape_cast %7 : vector<1x32x3xbf16> to vector<32x3xbf16>
    %cst_10 = arith.constant dense<0.000000e+00> : vector<32x384xf32>
    %9 = tpu.matmul %8, %6, %cst_10 {dimension_numbers = #tpu.dot_dimension_numbers<[1], [0], [0], [1], [0, 0, 1, 1], [], []>} : vector<32x3xbf16>, vector<3x384xbf16>, vector<32x384xf32> -> vector<32x384xf32>
    %10 = arith.addf %4, %9 : vector<32x384xf32>
    %c0_11 = arith.constant 0 : index
    %c0_12 = arith.constant 0 : index
    %c1_13 = arith.constant 1 : index
    %11 = vector.load %arg0[%c0_11, %c0_12, %c1_13] : memref<4x3x512xbf16, #tpu.memory_space<vmem>>, vector<1x3x384xbf16>
    %12 = vector.shape_cast %11 : vector<1x3x384xbf16> to vector<3x384xbf16>
    %c2 = arith.constant 2 : index
    %c0_14 = arith.constant 0 : index
    %c0_15 = arith.constant 0 : index
    %13 = vector.load %arg1[%c2, %c0_14, %c0_15] : memref<9x32x3xbf16, #tpu.memory_space<vmem>>, vector<1x32x3xbf16>
    %14 = vector.shape_cast %13 : vector<1x32x3xbf16> to vector<32x3xbf16>
    %cst_16 = arith.constant dense<0.000000e+00> : vector<32x384xf32>
    %15 = tpu.matmul %14, %12, %cst_16 {dimension_numbers = #tpu.dot_dimension_numbers<[1], [0], [0], [1], [0, 0, 1, 1], [], []>} : vector<32x3xbf16>, vector<3x384xbf16>, vector<32x384xf32> -> vector<32x384xf32>
    %16 = arith.addf %10, %15 : vector<32x384xf32>
    %c2_17 = arith.constant 2 : index
    %c0_18 = arith.constant 0 : index
    %c0_19 = arith.constant 0 : index
    %17 = vector.load %arg0[%c2_17, %c0_18, %c0_19] : memref<4x3x512xbf16, #tpu.memory_space<vmem>>, vector<1x3x384xbf16>
    %18 = vector.shape_cast %17 : vector<1x3x384xbf16> to vector<3x384xbf16>
    %c3 = arith.constant 3 : index
    %c0_20 = arith.constant 0 : index
    %c0_21 = arith.constant 0 : index
    %19 = vector.load %arg1[%c3, %c0_20, %c0_21] : memref<9x32x3xbf16, #tpu.memory_space<vmem>>, vector<1x32x3xbf16>
    %20 = vector.shape_cast %19 : vector<1x32x3xbf16> to vector<32x3xbf16>
    %cst_22 = arith.constant dense<0.000000e+00> : vector<32x384xf32>
    %21 = tpu.matmul %20, %18, %cst_22 {dimension_numbers = #tpu.dot_dimension_numbers<[1], [0], [0], [1], [0, 0, 1, 1], [], []>} : vector<32x3xbf16>, vector<3x384xbf16>, vector<32x384xf32> -> vector<32x384xf32>
    %22 = arith.addf %16, %21 : vector<32x384xf32>
    %c3_23 = arith.constant 3 : index
    %c0_24 = arith.constant 0 : index
    %c0_25 = arith.constant 0 : index
    %23 = vector.load %arg0[%c3_23, %c0_24, %c0_25] : memref<4x3x512xbf16, #tpu.memory_space<vmem>>, vector<1x3x384xbf16>
    %24 = vector.shape_cast %23 : vector<1x3x384xbf16> to vector<3x384xbf16>
    %c4 = arith.constant 4 : index
    %c0_26 = arith.constant 0 : index
    %c0_27 = arith.constant 0 : index
    %25 = vector.load %arg1[%c4, %c0_26, %c0_27] : memref<9x32x3xbf16, #tpu.memory_space<vmem>>, vector<1x32x3xbf16>
    %26 = vector.shape_cast %25 : vector<1x32x3xbf16> to vector<32x3xbf16>
    %cst_28 = arith.constant dense<0.000000e+00> : vector<32x384xf32>
    %27 = tpu.matmul %26, %24, %cst_28 {dimension_numbers = #tpu.dot_dimension_numbers<[1], [0], [0], [1], [0, 0, 1, 1], [], []>} : vector<32x3xbf16>, vector<3x384xbf16>, vector<32x384xf32> -> vector<32x384xf32>
    %28 = arith.addf %22, %27 : vector<32x384xf32>
    %c2_29 = arith.constant 2 : index
    %c0_30 = arith.constant 0 : index
    %c1_31 = arith.constant 1 : index
    %29 = vector.load %arg0[%c2_29, %c0_30, %c1_31] : memref<4x3x512xbf16, #tpu.memory_space<vmem>>, vector<1x3x384xbf16>
    %30 = vector.shape_cast %29 : vector<1x3x384xbf16> to vector<3x384xbf16>
    %c5 = arith.constant 5 : index
    %c0_32 = arith.constant 0 : index
    %c0_33 = arith.constant 0 : index
    %31 = vector.load %arg1[%c5, %c0_32, %c0_33] : memref<9x32x3xbf16, #tpu.memory_space<vmem>>, vector<1x32x3xbf16>
    %32 = vector.shape_cast %31 : vector<1x32x3xbf16> to vector<32x3xbf16>
    %cst_34 = arith.constant dense<0.000000e+00> : vector<32x384xf32>
    %33 = tpu.matmul %32, %30, %cst_34 {dimension_numbers = #tpu.dot_dimension_numbers<[1], [0], [0], [1], [0, 0, 1, 1], [], []>} : vector<32x3xbf16>, vector<3x384xbf16>, vector<32x384xf32> -> vector<32x384xf32>
    %34 = arith.addf %28, %33 : vector<32x384xf32>
    %c0_35 = arith.constant 0 : index
    %c0_36 = arith.constant 0 : index
    %c17 = arith.constant 17 : index
    %35 = vector.load %arg0[%c0_35, %c0_36, %c17] : memref<4x3x512xbf16, #tpu.memory_space<vmem>>, vector<1x3x384xbf16>
    %36 = vector.shape_cast %35 : vector<1x3x384xbf16> to vector<3x384xbf16>
    %c6 = arith.constant 6 : index
    %c0_37 = arith.constant 0 : index
    %c0_38 = arith.constant 0 : index
    %37 = vector.load %arg1[%c6, %c0_37, %c0_38] : memref<9x32x3xbf16, #tpu.memory_space<vmem>>, vector<1x32x3xbf16>
    %38 = vector.shape_cast %37 : vector<1x32x3xbf16> to vector<32x3xbf16>
    %cst_39 = arith.constant dense<0.000000e+00> : vector<32x384xf32>
    %39 = tpu.matmul %38, %36, %cst_39 {dimension_numbers = #tpu.dot_dimension_numbers<[1], [0], [0], [1], [0, 0, 1, 1], [], []>} : vector<32x3xbf16>, vector<3x384xbf16>, vector<32x384xf32> -> vector<32x384xf32>
    %40 = arith.addf %34, %39 : vector<32x384xf32>
    %c1_40 = arith.constant 1 : index
    %c0_41 = arith.constant 0 : index
    %c17_42 = arith.constant 17 : index
    %41 = vector.load %arg0[%c1_40, %c0_41, %c17_42] : memref<4x3x512xbf16, #tpu.memory_space<vmem>>, vector<1x3x384xbf16>
    %42 = vector.shape_cast %41 : vector<1x3x384xbf16> to vector<3x384xbf16>
    %c7 = arith.constant 7 : index
    %c0_43 = arith.constant 0 : index
    %c0_44 = arith.constant 0 : index
    %43 = vector.load %arg1[%c7, %c0_43, %c0_44] : memref<9x32x3xbf16, #tpu.memory_space<vmem>>, vector<1x32x3xbf16>
    %44 = vector.shape_cast %43 : vector<1x32x3xbf16> to vector<32x3xbf16>
    %cst_45 = arith.constant dense<0.000000e+00> : vector<32x384xf32>
    %45 = tpu.matmul %44, %42, %cst_45 {dimension_numbers = #tpu.dot_dimension_numbers<[1], [0], [0], [1], [0, 0, 1, 1], [], []>} : vector<32x3xbf16>, vector<3x384xbf16>, vector<32x384xf32> -> vector<32x384xf32>
    %46 = arith.addf %40, %45 : vector<32x384xf32>
    %c0_46 = arith.constant 0 : index
    %c0_47 = arith.constant 0 : index
    %c18 = arith.constant 18 : index
    %47 = vector.load %arg0[%c0_46, %c0_47, %c18] : memref<4x3x512xbf16, #tpu.memory_space<vmem>>, vector<1x3x384xbf16>
    %48 = vector.shape_cast %47 : vector<1x3x384xbf16> to vector<3x384xbf16>
    %c8 = arith.constant 8 : index
    %c0_48 = arith.constant 0 : index
    %c0_49 = arith.constant 0 : index
    %49 = vector.load %arg1[%c8, %c0_48, %c0_49] : memref<9x32x3xbf16, #tpu.memory_space<vmem>>, vector<1x32x3xbf16>
    %50 = vector.shape_cast %49 : vector<1x32x3xbf16> to vector<32x3xbf16>
    %cst_50 = arith.constant dense<0.000000e+00> : vector<32x384xf32>
    %51 = tpu.matmul %50, %48, %cst_50 {dimension_numbers = #tpu.dot_dimension_numbers<[1], [0], [0], [1], [0, 0, 1, 1], [], []>} : vector<32x3xbf16>, vector<3x384xbf16>, vector<32x384xf32> -> vector<32x384xf32>
    %52 = arith.addf %46, %51 : vector<32x384xf32>
    %c0_51 = arith.constant 0 : index
    %c0_52 = arith.constant 0 : index
    %53 = vector.load %arg2[%c0_51, %c0_52] : memref<32x1xf32, #tpu.memory_space<vmem>>, vector<32x1xf32>
    %54 = vector.broadcast %53 : vector<32x1xf32> to vector<32x384xf32>
    %55 = arith.addf %52, %54 : vector<32x384xf32>
    %cst_53 = arith.constant 0.000000e+00 : f32
    %56 = vector.broadcast %cst_53 : f32 to vector<32x384xf32>
    %57 = arith.maximumf %55, %56 : vector<32x384xf32>
    %c0_54 = arith.constant 0 : index
    %c0_55 = arith.constant 0 : index
    %58 = vector.load %arg3[%c0_54, %c0_55] : memref<32x384xf32, #tpu.memory_space<vmem>>, vector<32x384xf32>
    tpu.vector_store %arg3[%c0_54, %c0_55], %57 {strides = array<i32>} : memref<32x384xf32, #tpu.memory_space<vmem>>, vector<32x384xf32>,
    return
  }
}

</mosaic_0001>

<llo_original>
// kernel: _conv_nd.1
$region0: #{_conv_nd.1}
  #allocation0 [shape = 'u32[]', space=smem, size = 0x4, offset = 0x4, fixed_abs, tag = 'smem constant byte address 0x4 - core index']
  #allocation1 [shape = 'u32[72,128]{1,0:T(1,128)}', space=vmem, size = 0x9000, scoped, tag = 'internal scratch']
  %s0 = inlined_call_operand.vmem [shape: bf16[4,3,512], index: 0, kind: input, shape index: {}]
  %s1 = inlined_call_operand.vmem [shape: bf16[9,32,3], index: 1, kind: input, shape index: {}]
  %s2 = inlined_call_operand.vmem [shape: f32[32,1], index: 2, kind: input, shape index: {}]
  %s3 = inlined_call_operand.vmem [shape: f32[32,384], index: 3, kind: output, shape index: {}]
  %s4 = sld [smem:[#allocation0]]
  $region22: #{_conv_nd.1} parent=0
    _
  %s6 = ssub.s32 1, %s4
  %s7 = scalar_select 0, %s6, %s4
  // Predicated region
  $region2: #{_conv_nd.1} parent=0 // pred_check
    _
  $region3: #{_conv_nd.1} parent=0 // pred_check_branch
    %9 = sbr.rel (0) target = $region5
  $region4: #{_conv_nd.1} parent=0 // pred_region
    _
  $region5: #{_conv_nd.1} parent=0 // pred_fallthru
    _
  // Predicated region
  $region6: #{_conv_nd.1} parent=0 // pred_check
    _
  $region7: #{_conv_nd.1} parent=0 // pred_check_branch
    %11 = sbr.rel (0) target = $region9
  $region8: #{_conv_nd.1} parent=0 // pred_region
    _
  $region9: #{_conv_nd.1} parent=0 // pred_fallthru
    _
  // Predicated region
  $region10: #{_conv_nd.1} parent=0 // pred_check
    _
  $region11: #{_conv_nd.1} parent=0 // pred_check_branch
    %13 = sbr.rel (0) target = $region13
  $region12: #{_conv_nd.1} parent=0 // pred_region
    _
  $region13: #{_conv_nd.1} parent=0 // pred_fallthru
    _
  %v15 = vld [vmem:[%s0] sm:$0x3f]
  %v16 = vld [vmem:[%s1] sm:$0xf]
  %v17 = vld [vmem:[%s1 + $0x4] sm:$0xf]
  %v18 = vld [vmem:[%s1 + $0x8] sm:$0xf]
  %v19 = vld [vmem:[%s1 + $0xc] sm:$0xf]
  %s20 = scalar_lea.vmem %s0, 8
  %v21 = vld [vmem:[%s20] sm:$0x3f]
  %s22 = scalar_lea.vmem %s1, 16
  %v23 = vld [vmem:[%s22] sm:$0xf]
  %v24 = vld [vmem:[%s22 + $0x4] sm:$0xf]
  %v25 = vld [vmem:[%s22 + $0x8] sm:$0xf]
  %v26 = vld [vmem:[%s22 + $0xc] sm:$0xf]
  %v31 = vunpack.c.l.b16 %v23
  %v32 = vunpack.c.l.b16 %v24
  %v33 = vunpack.c.l.b16 %v25
  %v34 = vunpack.c.l.b16 %v26
  %v35 = vpack.c.b16 %v32, %v31
  %v36 = vpack.c.b16 %v34, %v33
  %38 = vst [vmem:[#allocation1] ss:$4 sm:$0xff] %v21
  %v39 = vld.sshfl [vmem:[#allocation1] sm:$0xff pattern:$0x73625140]
  %v40 = vld.sshfl [vmem:[#allocation1 + $0x8] sm:$0xff pattern:$0x73625140]
  %v41 = vld.sshfl [vmem:[#allocation1 + $0x10] sm:$0xff pattern:$0x73625140]
  %vm42 = vcmask 23552
  %v44 = vsel %vm42, %v35, 0
  %v47 = vsel %vm42, %v36, 0
  %vm49 = vcmask 1040384
  %vm50 = vcmask 1041408
  %v51 = vsel %vm49, 4294967295, 65535
  %v52 = vsel %vm50, %v51, 0
  %v53 = vand.u32 %v39, %v52
  %v55 = vand.u32 %v40, %v52
  %v57 = vand.u32 %v41, %v52
  %59 = vmatpush.bf16.msra.mxu0 0
  %60 = vmatpush.bf16.msra.mxu0 0
  %61 = vmatpush.bf16.msra.mxu0 0
  %62 = vmatpush.bf16.msra.mxu0 0
  %63 = vmatpush.bf16.msra.mxu0 0
  %64 = vmatpush.bf16.msra.mxu0 0
  %65 = vmatpush.bf16.msra.mxu0 0
  %66 = vmatpush.bf16.msra.mxu0 %v53
  %67 = vmatmul.bf16.gmra.mxu0 %v44
  %v68 = vpop.f32.mrf.mxu0
  %v69 = vadd.f32 0.0, %v68
  %v70 = vpop.f32.mrf.mxu0
  %v71 = vadd.f32 0.0, %v70
  %72 = vmatmul.bf16.gmra.mxu0 %v47
  %v73 = vpop.f32.mrf.mxu0
  %v74 = vadd.f32 0.0, %v73
  %v75 = vpop.f32.mrf.mxu0
  %v76 = vadd.f32 0.0, %v75
  %77 = vdwg.mxu0
  %78 = vmatpush.bf16.msra.mxu0 0
  %79 = vmatpush.bf16.msra.mxu0 0
  %80 = vmatpush.bf16.msra.mxu0 0
  %81 = vmatpush.bf16.msra.mxu0 0
  %82 = vmatpush.bf16.msra.mxu0 0
  %83 = vmatpush.bf16.msra.mxu0 0
  %84 = vmatpush.bf16.msra.mxu0 0
  %85 = vmatpush.bf16.msra.mxu0 %v55
  %86 = vmatmul.bf16.gmra.mxu0 %v44
  %v87 = vpop.f32.mrf.mxu0
  %v88 = vadd.f32 0.0, %v87
  %v89 = vpop.f32.mrf.mxu0
  %v90 = vadd.f32 0.0, %v89
  %91 = vmatmul.bf16.gmra.mxu0 %v47
  %v92 = vpop.f32.mrf.mxu0
  %v93 = vadd.f32 0.0, %v92
  %v94 = vpop.f32.mrf.mxu0
  %v95 = vadd.f32 0.0, %v94
  %96 = vdwg.mxu0
  %97 = vmatpush.bf16.msra.mxu0 0
  %98 = vmatpush.bf16.msra.mxu0 0
  %99 = vmatpush.bf16.msra.mxu0 0
  %100 = vmatpush.bf16.msra.mxu0 0
  %101 = vmatpush.bf16.msra.mxu0 0
  %102 = vmatpush.bf16.msra.mxu0 0
  %103 = vmatpush.bf16.msra.mxu0 0
  %104 = vmatpush.bf16.msra.mxu0 %v57
  %105 = vmatmul.bf16.gmra.mxu0 %v44
  %v106 = vpop.f32.mrf.mxu0
  %v107 = vadd.f32 0.0, %v106
  %v108 = vpop.f32.mrf.mxu0
  %v109 = vadd.f32 0.0, %v108
  %110 = vmatmul.bf16.gmra.mxu0 %v47
  %v111 = vpop.f32.mrf.mxu0
  %v112 = vadd.f32 0.0, %v111
  %v113 = vpop.f32.mrf.mxu0
  %v114 = vadd.f32 0.0, %v113
  %115 = vdwg.mxu0
  %v120 = vunpack.c.l.b16 %v16
  %v121 = vunpack.c.l.b16 %v17
  %v122 = vunpack.c.l.b16 %v18
  %v123 = vunpack.c.l.b16 %v19
  %v124 = vpack.c.b16 %v121, %v120
  %v125 = vpack.c.b16 %v123, %v122
  %127 = vst [vmem:[#allocation1] ss:$4 sm:$0xff] %v15
  %v128 = vld.sshfl [vmem:[#allocation1] sm:$0xff pattern:$0x73625140]
  %v129 = vld.sshfl [vmem:[#allocation1 + $0x8] sm:$0xff pattern:$0x73625140]
  %v130 = vld.sshfl [vmem:[#allocation1 + $0x10] sm:$0xff pattern:$0x73625140]
  %v132 = vsel %vm42, %v124, 0
  %v135 = vsel %vm42, %v125, 0
  %v137 = vand.u32 %v128, %v52
  %v139 = vand.u32 %v129, %v52
  %v141 = vand.u32 %v130, %v52
  %143 = vmatpush.bf16.msra.mxu0 0
  %144 = vmatpush.bf16.msra.mxu0 0
  %145 = vmatpush.bf16.msra.mxu0 0
  %146 = vmatpush.bf16.msra.mxu0 0
  %147 = vmatpush.bf16.msra.mxu0 0
  %148 = vmatpush.bf16.msra.mxu0 0
  %149 = vmatpush.bf16.msra.mxu0 0
  %150 = vmatpush.bf16.msra.mxu0 %v137
  %151 = vmatmul.bf16.gmra.mxu0 %v132
  %v152 = vpop.f32.mrf.mxu0
  %v153 = vadd.f32 %v69, %v152
  %v154 = vpop.f32.mrf.mxu0
  %v155 = vadd.f32 %v71, %v154
  %156 = vmatmul.bf16.gmra.mxu0 %v135
  %v157 = vpop.f32.mrf.mxu0
  %v158 = vadd.f32 %v74, %v157
  %v159 = vpop.f32.mrf.mxu0
  %v160 = vadd.f32 %v76, %v159
  %161 = vdwg.mxu0
  %162 = vmatpush.bf16.msra.mxu0 0
  %163 = vmatpush.bf16.msra.mxu0 0
  %164 = vmatpush.bf16.msra.mxu0 0
  %165 = vmatpush.bf16.msra.mxu0 0
  %166 = vmatpush.bf16.msra.mxu0 0
  %167 = vmatpush.bf16.msra.mxu0 0
  %168 = vmatpush.bf16.msra.mxu0 0
  %169 = vmatpush.bf16.msra.mxu0 %v139
  %170 = vmatmul.bf16.gmra.mxu0 %v132
  %v171 = vpop.f32.mrf.mxu0
  %v172 = vadd.f32 %v88, %v171
  %v173 = vpop.f32.mrf.mxu0
  %v174 = vadd.f32 %v90, %v173
  %175 = vmatmul.bf16.gmra.mxu0 %v135
  %v176 = vpop.f32.mrf.mxu0
  %v177 = vadd.f32 %v93, %v176
  %v178 = vpop.f32.mrf.mxu0
  %v179 = vadd.f32 %v95, %v178
  %180 = vdwg.mxu0
  %181 = vmatpush.bf16.msra.mxu0 0
  %182 = vmatpush.bf16.msra.mxu0 0
  %183 = vmatpush.bf16.msra.mxu0 0
  %184 = vmatpush.bf16.msra.mxu0 0
  %185 = vmatpush.bf16.msra.mxu0 0
  %186 = vmatpush.bf16.msra.mxu0 0
  %187 = vmatpush.bf16.msra.mxu0 0
  %188 = vmatpush.bf16.msra.mxu0 %v141
  %189 = vmatmul.bf16.gmra.mxu0 %v132
  %v190 = vpop.f32.mrf.mxu0
  %v191 = vadd.f32 %v107, %v190
  %v192 = vpop.f32.mrf.mxu0
  %v193 = vadd.f32 %v109, %v192
  %194 = vmatmul.bf16.gmra.mxu0 %v135
  %v195 = vpop.f32.mrf.mxu0
  %v196 = vadd.f32 %v112, %v195
  %v197 = vpop.f32.mrf.mxu0
  %v198 = vadd.f32 %v114, %v197
  %199 = vdwg.mxu0
  %v200 = vld [vmem:[%s0] sm:$0xff]
  %s201 = scalar_lea.vmem %s1, 32
  %v202 = vld [vmem:[%s201] sm:$0xf]
  %v203 = vld [vmem:[%s201 + $0x4] sm:$0xf]
  %v204 = vld [vmem:[%s201 + $0x8] sm:$0xf]
  %v205 = vld [vmem:[%s201 + $0xc] sm:$0xf]
  %v210 = vunpack.c.l.b16 %v202
  %v211 = vunpack.c.l.b16 %v203
  %v212 = vunpack.c.l.b16 %v204
  %v213 = vunpack.c.l.b16 %v205
  %v214 = vpack.c.b16 %v211, %v210
  %v215 = vpack.c.b16 %v213, %v212
  %217 = vst [vmem:[#allocation1] ss:$4 sm:$0xff] %v200
  %v218 = vld.sshfl [vmem:[#allocation1] sm:$0xff pattern:$0x73625140]
  %v220 = vld.sshfl [vmem:[#allocation1 + $0x8] sm:$0xff pattern:$0x73625140]
  %v222 = vld.sshfl [vmem:[#allocation1 + $0x10] sm:$0xff pattern:$0x73625140]
  %v224 = vld.sshfl [vmem:[#allocation1 + $0x18] sm:$0xff pattern:$0x73625140]
  %226 = vrot.lane.b32.xlu0 %v218, 127
  %v227 = vpop.permute.xlu0 %226
  %228 = vrot.lane.b32.xlu0 %v220, 127
  %v229 = vpop.permute.xlu0 %228
  %230 = vrot.lane.b32.xlu0 %v222, 127
  %v231 = vpop.permute.xlu0 %230
  %232 = vrot.lane.b32.xlu0 %v224, 127
  %v233 = vpop.permute.xlu0 %232
  %vm234 = vcmask 1039360
  %v235 = vsel %vm234, %v227, %v229
  %v236 = vsel %vm234, %v229, %v231
  %v237 = vsel %vm234, %v231, %v233
  %v239 = vsel %vm42, %v214, 0
  %v242 = vsel %vm42, %v215, 0
  %v245 = vand.u32 %v235, %v52
  %v248 = vand.u32 %v236, %v52
  %v251 = vand.u32 %v237, %v52
  %253 = vmatpush.bf16.msra.mxu0 0
  %254 = vmatpush.bf16.msra.mxu0 0
  %255 = vmatpush.bf16.msra.mxu0 0
  %256 = vmatpush.bf16.msra.mxu0 0
  %257 = vmatpush.bf16.msra.mxu0 0
  %258 = vmatpush.bf16.msra.mxu0 0
  %259 = vmatpush.bf16.msra.mxu0 0
  %260 = vmatpush.bf16.msra.mxu0 %v245
  %261 = vmatmul.bf16.gmra.mxu0 %v239
  %v262 = vpop.f32.mrf.mxu0
  %v263 = vadd.f32 0.0, %v262
  %v264 = vpop.f32.mrf.mxu0
  %v265 = vadd.f32 0.0, %v264
  %266 = vmatmul.bf16.gmra.mxu0 %v242
  %v267 = vpop.f32.mrf.mxu0
  %v268 = vadd.f32 0.0, %v267
  %v269 = vpop.f32.mrf.mxu0
  %v270 = vadd.f32 0.0, %v269
  %271 = vdwg.mxu0
  %272 = vmatpush.bf16.msra.mxu0 0
  %273 = vmatpush.bf16.msra.mxu0 0
  %274 = vmatpush.bf16.msra.mxu0 0
  %275 = vmatpush.bf16.msra.mxu0 0
  %276 = vmatpush.bf16.msra.mxu0 0
  %277 = vmatpush.bf16.msra.mxu0 0
  %278 = vmatpush.bf16.msra.mxu0 0
  %279 = vmatpush.bf16.msra.mxu0 %v248
  %280 = vmatmul.bf16.gmra.mxu0 %v239
  %v281 = vpop.f32.mrf.mxu0
  %v282 = vadd.f32 0.0, %v281
  %v283 = vpop.f32.mrf.mxu0
  %v284 = vadd.f32 0.0, %v283
  %285 = vmatmul.bf16.gmra.mxu0 %v242
  %v286 = vpop.f32.mrf.mxu0
  %v287 = vadd.f32 0.0, %v286
  %v288 = vpop.f32.mrf.mxu0
  %v289 = vadd.f32 0.0, %v288
  %290 = vdwg.mxu0
  %291 = vmatpush.bf16.msra.mxu0 0
  %292 = vmatpush.bf16.msra.mxu0 0
  %293 = vmatpush.bf16.msra.mxu0 0
  %294 = vmatpush.bf16.msra.mxu0 0
  %295 = vmatpush.bf16.msra.mxu0 0
  %296 = vmatpush.bf16.msra.mxu0 0
  %297 = vmatpush.bf16.msra.mxu0 0
  %298 = vmatpush.bf16.msra.mxu0 %v251
  %299 = vmatmul.bf16.gmra.mxu0 %v239
  %v300 = vpop.f32.mrf.mxu0
  %v301 = vadd.f32 0.0, %v300
  %v302 = vpop.f32.mrf.mxu0
  %v303 = vadd.f32 0.0, %v302
  %304 = vmatmul.bf16.gmra.mxu0 %v242
  %v305 = vpop.f32.mrf.mxu0
  %v306 = vadd.f32 0.0, %v305
  %v307 = vpop.f32.mrf.mxu0
  %v308 = vadd.f32 0.0, %v307
  %309 = vdwg.mxu0
  %v310 = vadd.f32 %v153, %v263
  %v311 = vadd.f32 %v172, %v282
  %v312 = vadd.f32 %v191, %v301
  %v313 = vadd.f32 %v155, %v265
  %v314 = vadd.f32 %v174, %v284
  %v315 = vadd.f32 %v193, %v303
  %v316 = vadd.f32 %v158, %v268
  %v317 = vadd.f32 %v177, %v287
  %v318 = vadd.f32 %v196, %v306
  %v319 = vadd.f32 %v160, %v270
  %v320 = vadd.f32 %v179, %v289
  %v321 = vadd.f32 %v198, %v308
  %s322 = scalar_lea.vmem %s0, 16
  %v323 = vld [vmem:[%s322] sm:$0x3f]
  %s324 = scalar_lea.vmem %s1, 48
  %v325 = vld [vmem:[%s324] sm:$0xf]
  %v326 = vld [vmem:[%s324 + $0x4] sm:$0xf]
  %v327 = vld [vmem:[%s324 + $0x8] sm:$0xf]
  %v328 = vld [vmem:[%s324 + $0xc] sm:$0xf]
  %v333 = vunpack.c.l.b16 %v325
  %v334 = vunpack.c.l.b16 %v326
  %v335 = vunpack.c.l.b16 %v327
  %v336 = vunpack.c.l.b16 %v328
  %v337 = vpack.c.b16 %v334, %v333
  %v338 = vpack.c.b16 %v336, %v335
  %340 = vst [vmem:[#allocation1] ss:$4 sm:$0xff] %v323
  %v341 = vld.sshfl [vmem:[#allocation1] sm:$0xff pattern:$0x73625140]
  %v342 = vld.sshfl [vmem:[#allocation1 + $0x8] sm:$0xff pattern:$0x73625140]
  %v343 = vld.sshfl [vmem:[#allocation1 + $0x10] sm:$0xff pattern:$0x73625140]
  %v345 = vsel %vm42, %v337, 0
  %v348 = vsel %vm42, %v338, 0
  %v350 = vand.u32 %v341, %v52
  %v352 = vand.u32 %v342, %v52
  %v354 = vand.u32 %v343, %v52
  %356 = vmatpush.bf16.msra.mxu0 0
  %357 = vmatpush.bf16.msra.mxu0 0
  %358 = vmatpush.bf16.msra.mxu0 0
  %359 = vmatpush.bf16.msra.mxu0 0
  %360 = vmatpush.bf16.msra.mxu0 0
  %361 = vmatpush.bf16.msra.mxu0 0
  %362 = vmatpush.bf16.msra.mxu0 0
  %363 = vmatpush.bf16.msra.mxu0 %v350
  %364 = vmatmul.bf16.gmra.mxu0 %v345
  %v365 = vpop.f32.mrf.mxu0
  %v366 = vadd.f32 0.0, %v365
  %v367 = vpop.f32.mrf.mxu0
  %v368 = vadd.f32 0.0, %v367
  %369 = vmatmul.bf16.gmra.mxu0 %v348
  %v370 = vpop.f32.mrf.mxu0
  %v371 = vadd.f32 0.0, %v370
  %v372 = vpop.f32.mrf.mxu0
  %v373 = vadd.f32 0.0, %v372
  %374 = vdwg.mxu0
  %375 = vmatpush.bf16.msra.mxu0 0
  %376 = vmatpush.bf16.msra.mxu0 0
  %377 = vmatpush.bf16.msra.mxu0 0
  %378 = vmatpush.bf16.msra.mxu0 0
  %379 = vmatpush.bf16.msra.mxu0 0
  %380 = vmatpush.bf16.msra.mxu0 0
  %381 = vmatpush.bf16.msra.mxu0 0
  %382 = vmatpush.bf16.msra.mxu0 %v352
  %383 = vmatmul.bf16.gmra.mxu0 %v345
  %v384 = vpop.f32.mrf.mxu0
  %v385 = vadd.f32 0.0, %v384
  %v386 = vpop.f32.mrf.mxu0
  %v387 = vadd.f32 0.0, %v386
  %388 = vmatmul.bf16.gmra.mxu0 %v348
  %v389 = vpop.f32.mrf.mxu0
  %v390 = vadd.f32 0.0, %v389
  %v391 = vpop.f32.mrf.mxu0
  %v392 = vadd.f32 0.0, %v391
  %393 = vdwg.mxu0
  %394 = vmatpush.bf16.msra.mxu0 0
  %395 = vmatpush.bf16.msra.mxu0 0
  %396 = vmatpush.bf16.msra.mxu0 0
  %397 = vmatpush.bf16.msra.mxu0 0
  %398 = vmatpush.bf16.msra.mxu0 0
  %399 = vmatpush.bf16.msra.mxu0 0
  %400 = vmatpush.bf16.msra.mxu0 0
  %401 = vmatpush.bf16.msra.mxu0 %v354
  %402 = vmatmul.bf16.gmra.mxu0 %v345
  %v403 = vpop.f32.mrf.mxu0
  %v404 = vadd.f32 0.0, %v403
  %v405 = vpop.f32.mrf.mxu0
  %v406 = vadd.f32 0.0, %v405
  %407 = vmatmul.bf16.gmra.mxu0 %v348
  %v408 = vpop.f32.mrf.mxu0
  %v409 = vadd.f32 0.0, %v408
  %v410 = vpop.f32.mrf.mxu0
  %v411 = vadd.f32 0.0, %v410
  %412 = vdwg.mxu0
  %v413 = vadd.f32 %v310, %v366
  %v414 = vadd.f32 %v311, %v385
  %v415 = vadd.f32 %v312, %v404
  %v416 = vadd.f32 %v313, %v368
  %v417 = vadd.f32 %v314, %v387
  %v418 = vadd.f32 %v315, %v406
  %v419 = vadd.f32 %v316, %v371
  %v420 = vadd.f32 %v317, %v390
  %v421 = vadd.f32 %v318, %v409
  %v422 = vadd.f32 %v319, %v373
  %v423 = vadd.f32 %v320, %v392
  %v424 = vadd.f32 %v321, %v411
  %s425 = scalar_lea.vmem %s0, 24
  %v426 = vld [vmem:[%s425] sm:$0x3f]
  %s427 = scalar_lea.vmem %s1, 64
  %v428 = vld [vmem:[%s427] sm:$0xf]
  %v429 = vld [vmem:[%s427 + $0x4] sm:$0xf]
  %v430 = vld [vmem:[%s427 + $0x8] sm:$0xf]
  %v431 = vld [vmem:[%s427 + $0xc] sm:$0xf]
  %v436 = vunpack.c.l.b16 %v428
  %v437 = vunpack.c.l.b16 %v429
  %v438 = vunpack.c.l.b16 %v430
  %v439 = vunpack.c.l.b16 %v431
  %v440 = vpack.c.b16 %v437, %v436
  %v441 = vpack.c.b16 %v439, %v438
  %443 = vst [vmem:[#allocation1] ss:$4 sm:$0xff] %v426
  %v444 = vld.sshfl [vmem:[#allocation1] sm:$0xff pattern:$0x73625140]
  %v445 = vld.sshfl [vmem:[#allocation1 + $0x8] sm:$0xff pattern:$0x73625140]
  %v446 = vld.sshfl [vmem:[#allocation1 + $0x10] sm:$0xff pattern:$0x73625140]
  %v448 = vsel %vm42, %v440, 0
  %v451 = vsel %vm42, %v441, 0
  %v453 = vand.u32 %v444, %v52
  %v455 = vand.u32 %v445, %v52
  %v457 = vand.u32 %v446, %v52
  %459 = vmatpush.bf16.msra.mxu0 0
  %460 = vmatpush.bf16.msra.mxu0 0
  %461 = vmatpush.bf16.msra.mxu0 0
  %462 = vmatpush.bf16.msra.mxu0 0
  %463 = vmatpush.bf16.msra.mxu0 0
  %464 = vmatpush.bf16.msra.mxu0 0
  %465 = vmatpush.bf16.msra.mxu0 0
  %466 = vmatpush.bf16.msra.mxu0 %v453
  %467 = vmatmul.bf16.gmra.mxu0 %v448
  %v468 = vpop.f32.mrf.mxu0
  %v469 = vadd.f32 0.0, %v468
  %v470 = vpop.f32.mrf.mxu0
  %v471 = vadd.f32 0.0, %v470
  %472 = vmatmul.bf16.gmra.mxu0 %v451
  %v473 = vpop.f32.mrf.mxu0
  %v474 = vadd.f32 0.0, %v473
  %v475 = vpop.f32.mrf.mxu0
  %v476 = vadd.f32 0.0, %v475
  %477 = vdwg.mxu0
  %478 = vmatpush.bf16.msra.mxu0 0
  %479 = vmatpush.bf16.msra.mxu0 0
  %480 = vmatpush.bf16.msra.mxu0 0
  %481 = vmatpush.bf16.msra.mxu0 0
  %482 = vmatpush.bf16.msra.mxu0 0
  %483 = vmatpush.bf16.msra.mxu0 0
  %484 = vmatpush.bf16.msra.mxu0 0
  %485 = vmatpush.bf16.msra.mxu0 %v455
  %486 = vmatmul.bf16.gmra.mxu0 %v448
  %v487 = vpop.f32.mrf.mxu0
  %v488 = vadd.f32 0.0, %v487
  %v489 = vpop.f32.mrf.mxu0
  %v490 = vadd.f32 0.0, %v489
  %491 = vmatmul.bf16.gmra.mxu0 %v451
  %v492 = vpop.f32.mrf.mxu0
  %v493 = vadd.f32 0.0, %v492
  %v494 = vpop.f32.mrf.mxu0
  %v495 = vadd.f32 0.0, %v494
  %496 = vdwg.mxu0
  %497 = vmatpush.bf16.msra.mxu0 0
  %498 = vmatpush.bf16.msra.mxu0 0
  %499 = vmatpush.bf16.msra.mxu0 0
  %500 = vmatpush.bf16.msra.mxu0 0
  %501 = vmatpush.bf16.msra.mxu0 0
  %502 = vmatpush.bf16.msra.mxu0 0
  %503 = vmatpush.bf16.msra.mxu0 0
  %504 = vmatpush.bf16.msra.mxu0 %v457
  %505 = vmatmul.bf16.gmra.mxu0 %v448
  %v506 = vpop.f32.mrf.mxu0
  %v507 = vadd.f32 0.0, %v506
  %v508 = vpop.f32.mrf.mxu0
  %v509 = vadd.f32 0.0, %v508
  %510 = vmatmul.bf16.gmra.mxu0 %v451
  %v511 = vpop.f32.mrf.mxu0
  %v512 = vadd.f32 0.0, %v511
  %v513 = vpop.f32.mrf.mxu0
  %v514 = vadd.f32 0.0, %v513
  %515 = vdwg.mxu0
  %v516 = vadd.f32 %v413, %v469
  %v517 = vadd.f32 %v414, %v488
  %v518 = vadd.f32 %v415, %v507
  %v519 = vadd.f32 %v416, %v471
  %v520 = vadd.f32 %v417, %v490
  %v521 = vadd.f32 %v418, %v509
  %v522 = vadd.f32 %v419, %v474
  %v523 = vadd.f32 %v420, %v493
  %v524 = vadd.f32 %v421, %v512
  %v525 = vadd.f32 %v422, %v476
  %v526 = vadd.f32 %v423, %v495
  %v527 = vadd.f32 %v424, %v514
  %v528 = vld [vmem:[%s322] sm:$0xff]
  %s529 = scalar_lea.vmem %s1, 80
  %v530 = vld [vmem:[%s529] sm:$0xf]
  %v531 = vld [vmem:[%s529 + $0x4] sm:$0xf]
  %v532 = vld [vmem:[%s529 + $0x8] sm:$0xf]
  %v533 = vld [vmem:[%s529 + $0xc] sm:$0xf]
  %v538 = vunpack.c.l.b16 %v530
  %v539 = vunpack.c.l.b16 %v531
  %v540 = vunpack.c.l.b16 %v532
  %v541 = vunpack.c.l.b16 %v533
  %v542 = vpack.c.b16 %v539, %v538
  %v543 = vpack.c.b16 %v541, %v540
  %545 = vst [vmem:[#allocation1] ss:$4 sm:$0xff] %v528
  %v546 = vld.sshfl [vmem:[#allocation1] sm:$0xff pattern:$0x73625140]
  %v548 = vld.sshfl [vmem:[#allocation1 + $0x8] sm:$0xff pattern:$0x73625140]
  %v550 = vld.sshfl [vmem:[#allocation1 + $0x10] sm:$0xff pattern:$0x73625140]
  %v552 = vld.sshfl [vmem:[#allocation1 + $0x18] sm:$0xff pattern:$0x73625140]
  %554 = vrot.lane.b32.xlu0 %v546, 127
  %v555 = vpop.permute.xlu0 %554
  %556 = vrot.lane.b32.xlu0 %v548, 127
  %v557 = vpop.permute.xlu0 %556
  %558 = vrot.lane.b32.xlu0 %v550, 127
  %v559 = vpop.permute.xlu0 %558
  %560 = vrot.lane.b32.xlu0 %v552, 127
  %v561 = vpop.permute.xlu0 %560
  %v562 = vsel %vm234, %v555, %v557
  %v563 = vsel %vm234, %v557, %v559
  %v564 = vsel %vm234, %v559, %v561
  %v566 = vsel %vm42, %v542, 0
  %v569 = vsel %vm42, %v543, 0
  %v572 = vand.u32 %v562, %v52
  %v575 = vand.u32 %v563, %v52
  %v578 = vand.u32 %v564, %v52
  %580 = vmatpush.bf16.msra.mxu0 0
  %581 = vmatpush.bf16.msra.mxu0 0
  %582 = vmatpush.bf16.msra.mxu0 0
  %583 = vmatpush.bf16.msra.mxu0 0
  %584 = vmatpush.bf16.msra.mxu0 0
  %585 = vmatpush.bf16.msra.mxu0 0
  %586 = vmatpush.bf16.msra.mxu0 0
  %587 = vmatpush.bf16.msra.mxu0 %v572
  %588 = vmatmul.bf16.gmra.mxu0 %v566
  %v589 = vpop.f32.mrf.mxu0
  %v590 = vadd.f32 0.0, %v589
  %v591 = vpop.f32.mrf.mxu0
  %v592 = vadd.f32 0.0, %v591
  %593 = vmatmul.bf16.gmra.mxu0 %v569
  %v594 = vpop.f32.mrf.mxu0
  %v595 = vadd.f32 0.0, %v594
  %v596 = vpop.f32.mrf.mxu0
  %v597 = vadd.f32 0.0, %v596
  %598 = vdwg.mxu0
  %599 = vmatpush.bf16.msra.mxu0 0
  %600 = vmatpush.bf16.msra.mxu0 0
  %601 = vmatpush.bf16.msra.mxu0 0
  %602 = vmatpush.bf16.msra.mxu0 0
  %603 = vmatpush.bf16.msra.mxu0 0
  %604 = vmatpush.bf16.msra.mxu0 0
  %605 = vmatpush.bf16.msra.mxu0 0
  %606 = vmatpush.bf16.msra.mxu0 %v575
  %607 = vmatmul.bf16.gmra.mxu0 %v566
  %v608 = vpop.f32.mrf.mxu0
  %v609 = vadd.f32 0.0, %v608
  %v610 = vpop.f32.mrf.mxu0
  %v611 = vadd.f32 0.0, %v610
  %612 = vmatmul.bf16.gmra.mxu0 %v569
  %v613 = vpop.f32.mrf.mxu0
  %v614 = vadd.f32 0.0, %v613
  %v615 = vpop.f32.mrf.mxu0
  %v616 = vadd.f32 0.0, %v615
  %617 = vdwg.mxu0
  %618 = vmatpush.bf16.msra.mxu0 0
  %619 = vmatpush.bf16.msra.mxu0 0
  %620 = vmatpush.bf16.msra.mxu0 0
  %621 = vmatpush.bf16.msra.mxu0 0
  %622 = vmatpush.bf16.msra.mxu0 0
  %623 = vmatpush.bf16.msra.mxu0 0
  %624 = vmatpush.bf16.msra.mxu0 0
  %625 = vmatpush.bf16.msra.mxu0 %v578
  %626 = vmatmul.bf16.gmra.mxu0 %v566
  %v627 = vpop.f32.mrf.mxu0
  %v628 = vadd.f32 0.0, %v627
  %v629 = vpop.f32.mrf.mxu0
  %v630 = vadd.f32 0.0, %v629
  %631 = vmatmul.bf16.gmra.mxu0 %v569
  %v632 = vpop.f32.mrf.mxu0
  %v633 = vadd.f32 0.0, %v632
  %v634 = vpop.f32.mrf.mxu0
  %v635 = vadd.f32 0.0, %v634
  %636 = vdwg.mxu0
  %v637 = vadd.f32 %v516, %v590
  %v638 = vadd.f32 %v517, %v609
  %v639 = vadd.f32 %v518, %v628
  %v640 = vadd.f32 %v519, %v592
  %v641 = vadd.f32 %v520, %v611
  %v642 = vadd.f32 %v521, %v630
  %v643 = vadd.f32 %v522, %v595
  %v644 = vadd.f32 %v523, %v614
  %v645 = vadd.f32 %v524, %v633
  %v646 = vadd.f32 %v525, %v597
  %v647 = vadd.f32 %v526, %v616
  %v648 = vadd.f32 %v527, %v635
  %v649 = vld [vmem:[%s0] sm:$0xff]
  %s650 = scalar_lea.vmem %s1, 96
  %v651 = vld [vmem:[%s650] sm:$0xf]
  %v652 = vld [vmem:[%s650 + $0x4] sm:$0xf]
  %v653 = vld [vmem:[%s650 + $0x8] sm:$0xf]
  %v654 = vld [vmem:[%s650 + $0xc] sm:$0xf]
  %v659 = vunpack.c.l.b16 %v651
  %v660 = vunpack.c.l.b16 %v652
  %v661 = vunpack.c.l.b16 %v653
  %v662 = vunpack.c.l.b16 %v654
  %v663 = vpack.c.b16 %v660, %v659
  %v664 = vpack.c.b16 %v662, %v661
  %666 = vst [vmem:[#allocation1] ss:$4 sm:$0xff] %v649
  %v667 = vld.sshfl [vmem:[#allocation1] sm:$0xff pattern:$0x73625140]
  %v669 = vld.sshfl [vmem:[#allocation1 + $0x8] sm:$0xff pattern:$0x73625140]
  %v671 = vld.sshfl [vmem:[#allocation1 + $0x10] sm:$0xff pattern:$0x73625140]
  %v673 = vld.sshfl [vmem:[#allocation1 + $0x18] sm:$0xff pattern:$0x73625140]
  %675 = vrot.lane.b32.xlu0 %v667, 111
  %v676 = vpop.permute.xlu0 %675
  %677 = vrot.lane.b32.xlu0 %v669, 111
  %v678 = vpop.permute.xlu0 %677
  %679 = vrot.lane.b32.xlu0 %v671, 111
  %v680 = vpop.permute.xlu0 %679
  %681 = vrot.lane.b32.xlu0 %v673, 111
  %v682 = vpop.permute.xlu0 %681
  %vm683 = vcmask 908288
  %v684 = vsel %vm683, %v676, %v678
  %v685 = vsel %vm683, %v678, %v680
  %v686 = vsel %vm683, %v680, %v682
  %v688 = vsel %vm42, %v663, 0
  %v691 = vsel %vm42, %v664, 0
  %v694 = vand.u32 %v684, %v52
  %v697 = vand.u32 %v685, %v52
  %v700 = vand.u32 %v686, %v52
  %702 = vmatpush.bf16.msra.mxu0 0
  %703 = vmatpush.bf16.msra.mxu0 0
  %704 = vmatpush.bf16.msra.mxu0 0
  %705 = vmatpush.bf16.msra.mxu0 0
  %706 = vmatpush.bf16.msra.mxu0 0
  %707 = vmatpush.bf16.msra.mxu0 0
  %708 = vmatpush.bf16.msra.mxu0 0
  %709 = vmatpush.bf16.msra.mxu0 %v694
  %710 = vmatmul.bf16.gmra.mxu0 %v688
  %v711 = vpop.f32.mrf.mxu0
  %v712 = vadd.f32 0.0, %v711
  %v713 = vpop.f32.mrf.mxu0
  %v714 = vadd.f32 0.0, %v713
  %715 = vmatmul.bf16.gmra.mxu0 %v691
  %v716 = vpop.f32.mrf.mxu0
  %v717 = vadd.f32 0.0, %v716
  %v718 = vpop.f32.mrf.mxu0
  %v719 = vadd.f32 0.0, %v718
  %720 = vdwg.mxu0
  %721 = vmatpush.bf16.msra.mxu0 0
  %722 = vmatpush.bf16.msra.mxu0 0
  %723 = vmatpush.bf16.msra.mxu0 0
  %724 = vmatpush.bf16.msra.mxu0 0
  %725 = vmatpush.bf16.msra.mxu0 0
  %726 = vmatpush.bf16.msra.mxu0 0
  %727 = vmatpush.bf16.msra.mxu0 0
  %728 = vmatpush.bf16.msra.mxu0 %v697
  %729 = vmatmul.bf16.gmra.mxu0 %v688
  %v730 = vpop.f32.mrf.mxu0
  %v731 = vadd.f32 0.0, %v730
  %v732 = vpop.f32.mrf.mxu0
  %v733 = vadd.f32 0.0, %v732
  %734 = vmatmul.bf16.gmra.mxu0 %v691
  %v735 = vpop.f32.mrf.mxu0
  %v736 = vadd.f32 0.0, %v735
  %v737 = vpop.f32.mrf.mxu0
  %v738 = vadd.f32 0.0, %v737
  %739 = vdwg.mxu0
  %740 = vmatpush.bf16.msra.mxu0 0
  %741 = vmatpush.bf16.msra.mxu0 0
  %742 = vmatpush.bf16.msra.mxu0 0
  %743 = vmatpush.bf16.msra.mxu0 0
  %744 = vmatpush.bf16.msra.mxu0 0
  %745 = vmatpush.bf16.msra.mxu0 0
  %746 = vmatpush.bf16.msra.mxu0 0
  %747 = vmatpush.bf16.msra.mxu0 %v700
  %748 = vmatmul.bf16.gmra.mxu0 %v688
  %v749 = vpop.f32.mrf.mxu0
  %v750 = vadd.f32 0.0, %v749
  %v751 = vpop.f32.mrf.mxu0
  %v752 = vadd.f32 0.0, %v751
  %753 = vmatmul.bf16.gmra.mxu0 %v691
  %v754 = vpop.f32.mrf.mxu0
  %v755 = vadd.f32 0.0, %v754
  %v756 = vpop.f32.mrf.mxu0
  %v757 = vadd.f32 0.0, %v756
  %758 = vdwg.mxu0
  %v759 = vadd.f32 %v637, %v712
  %v760 = vadd.f32 %v638, %v731
  %v761 = vadd.f32 %v639, %v750
  %v762 = vadd.f32 %v640, %v714
  %v763 = vadd.f32 %v641, %v733
  %v764 = vadd.f32 %v642, %v752
  %v765 = vadd.f32 %v643, %v717
  %v766 = vadd.f32 %v644, %v736
  %v767 = vadd.f32 %v645, %v755
  %v768 = vadd.f32 %v646, %v719
  %v769 = vadd.f32 %v647, %v738
  %v770 = vadd.f32 %v648, %v757
  %v771 = vld [vmem:[%s20] sm:$0xff]
  %s772 = scalar_lea.vmem %s1, 112
  %v773 = vld [vmem:[%s772] sm:$0xf]
  %v774 = vld [vmem:[%s772 + $0x4] sm:$0xf]
  %v775 = vld [vmem:[%s772 + $0x8] sm:$0xf]
  %v776 = vld [vmem:[%s772 + $0xc] sm:$0xf]
  %v781 = vunpack.c.l.b16 %v773
  %v782 = vunpack.c.l.b16 %v774
  %v783 = vunpack.c.l.b16 %v775
  %v784 = vunpack.c.l.b16 %v776
  %v785 = vpack.c.b16 %v782, %v781
  %v786 = vpack.c.b16 %v784, %v783
  %788 = vst [vmem:[#allocation1] ss:$4 sm:$0xff] %v771
  %v789 = vld.sshfl [vmem:[#allocation1] sm:$0xff pattern:$0x73625140]
  %v791 = vld.sshfl [vmem:[#allocation1 + $0x8] sm:$0xff pattern:$0x73625140]
  %v793 = vld.sshfl [vmem:[#allocation1 + $0x10] sm:$0xff pattern:$0x73625140]
  %v795 = vld.sshfl [vmem:[#allocation1 + $0x18] sm:$0xff pattern:$0x73625140]
  %797 = vrot.lane.b32.xlu0 %v789, 111
  %v798 = vpop.permute.xlu0 %797
  %799 = vrot.lane.b32.xlu0 %v791, 111
  %v800 = vpop.permute.xlu0 %799
  %801 = vrot.lane.b32.xlu0 %v793, 111
  %v802 = vpop.permute.xlu0 %801
  %803 = vrot.lane.b32.xlu0 %v795, 111
  %v804 = vpop.permute.xlu0 %803
  %v805 = vsel %vm683, %v798, %v800
  %v806 = vsel %vm683, %v800, %v802
  %v807 = vsel %vm683, %v802, %v804
  %v809 = vsel %vm42, %v785, 0
  %v812 = vsel %vm42, %v786, 0
  %v815 = vand.u32 %v805, %v52
  %v818 = vand.u32 %v806, %v52
  %v821 = vand.u32 %v807, %v52
  %823 = vmatpush.bf16.msra.mxu0 0
  %824 = vmatpush.bf16.msra.mxu0 0
  %825 = vmatpush.bf16.msra.mxu0 0
  %826 = vmatpush.bf16.msra.mxu0 0
  %827 = vmatpush.bf16.msra.mxu0 0
  %828 = vmatpush.bf16.msra.mxu0 0
  %829 = vmatpush.bf16.msra.mxu0 0
  %830 = vmatpush.bf16.msra.mxu0 %v815
  %831 = vmatmul.bf16.gmra.mxu0 %v809
  %v832 = vpop.f32.mrf.mxu0
  %v833 = vadd.f32 0.0, %v832
  %v834 = vpop.f32.mrf.mxu0
  %v835 = vadd.f32 0.0, %v834
  %836 = vmatmul.bf16.gmra.mxu0 %v812
  %v837 = vpop.f32.mrf.mxu0
  %v838 = vadd.f32 0.0, %v837
  %v839 = vpop.f32.mrf.mxu0
  %v840 = vadd.f32 0.0, %v839
  %841 = vdwg.mxu0
  %842 = vmatpush.bf16.msra.mxu0 0
  %843 = vmatpush.bf16.msra.mxu0 0
  %844 = vmatpush.bf16.msra.mxu0 0
  %845 = vmatpush.bf16.msra.mxu0 0
  %846 = vmatpush.bf16.msra.mxu0 0
  %847 = vmatpush.bf16.msra.mxu0 0
  %848 = vmatpush.bf16.msra.mxu0 0
  %849 = vmatpush.bf16.msra.mxu0 %v818
  %850 = vmatmul.bf16.gmra.mxu0 %v809
  %v851 = vpop.f32.mrf.mxu0
  %v852 = vadd.f32 0.0, %v851
  %v853 = vpop.f32.mrf.mxu0
  %v854 = vadd.f32 0.0, %v853
  %855 = vmatmul.bf16.gmra.mxu0 %v812
  %v856 = vpop.f32.mrf.mxu0
  %v857 = vadd.f32 0.0, %v856
  %v858 = vpop.f32.mrf.mxu0
  %v859 = vadd.f32 0.0, %v858
  %860 = vdwg.mxu0
  %861 = vmatpush.bf16.msra.mxu0 0
  %862 = vmatpush.bf16.msra.mxu0 0
  %863 = vmatpush.bf16.msra.mxu0 0
  %864 = vmatpush.bf16.msra.mxu0 0
  %865 = vmatpush.bf16.msra.mxu0 0
  %866 = vmatpush.bf16.msra.mxu0 0
  %867 = vmatpush.bf16.msra.mxu0 0
  %868 = vmatpush.bf16.msra.mxu0 %v821
  %869 = vmatmul.bf16.gmra.mxu0 %v809
  %v870 = vpop.f32.mrf.mxu0
  %v871 = vadd.f32 0.0, %v870
  %v872 = vpop.f32.mrf.mxu0
  %v873 = vadd.f32 0.0, %v872
  %874 = vmatmul.bf16.gmra.mxu0 %v812
  %v875 = vpop.f32.mrf.mxu0
  %v876 = vadd.f32 0.0, %v875
  %v877 = vpop.f32.mrf.mxu0
  %v878 = vadd.f32 0.0, %v877
  %879 = vdwg.mxu0
  %v880 = vadd.f32 %v759, %v833
  %v881 = vadd.f32 %v760, %v852
  %v882 = vadd.f32 %v761, %v871
  %v883 = vadd.f32 %v762, %v835
  %v884 = vadd.f32 %v763, %v854
  %v885 = vadd.f32 %v764, %v873
  %v886 = vadd.f32 %v765, %v838
  %v887 = vadd.f32 %v766, %v857
  %v888 = vadd.f32 %v767, %v876
  %v889 = vadd.f32 %v768, %v840
  %v890 = vadd.f32 %v769, %v859
  %v891 = vadd.f32 %v770, %v878
  %v892 = vld [vmem:[%s0] sm:$0xff]
  %s893 = scalar_lea.vmem %s1, 128
  %v894 = vld [vmem:[%s893] sm:$0xf]
  %v895 = vld [vmem:[%s893 + $0x4] sm:$0xf]
  %v896 = vld [vmem:[%s893 + $0x8] sm:$0xf]
  %v897 = vld [vmem:[%s893 + $0xc] sm:$0xf]
  %v902 = vunpack.c.l.b16 %v894
  %v903 = vunpack.c.l.b16 %v895
  %v904 = vunpack.c.l.b16 %v896
  %v905 = vunpack.c.l.b16 %v897
  %v906 = vpack.c.b16 %v903, %v902
  %v907 = vpack.c.b16 %v905, %v904
  %909 = vst [vmem:[#allocation1] ss:$4 sm:$0xff] %v892
  %v910 = vld.sshfl [vmem:[#allocation1] sm:$0xff pattern:$0x73625140]
  %v912 = vld.sshfl [vmem:[#allocation1 + $0x8] sm:$0xff pattern:$0x73625140]
  %v914 = vld.sshfl [vmem:[#allocation1 + $0x10] sm:$0xff pattern:$0x73625140]
  %v916 = vld.sshfl [vmem:[#allocation1 + $0x18] sm:$0xff pattern:$0x73625140]
  %918 = vrot.lane.b32.xlu0 %v910, 110
  %v919 = vpop.permute.xlu0 %918
  %920 = vrot.lane.b32.xlu0 %v912, 110
  %v921 = vpop.permute.xlu0 %920
  %922 = vrot.lane.b32.xlu0 %v914, 110
  %v923 = vpop.permute.xlu0 %922
  %924 = vrot.lane.b32.xlu0 %v916, 110
  %v925 = vpop.permute.xlu0 %924
  %vm926 = vcmask 900096
  %v927 = vsel %vm926, %v919, %v921
  %v928 = vsel %vm926, %v921, %v923
  %v929 = vsel %vm926, %v923, %v925
  %v931 = vsel %vm42, %v906, 0
  %v934 = vsel %vm42, %v907, 0
  %v937 = vand.u32 %v927, %v52
  %v940 = vand.u32 %v928, %v52
  %v943 = vand.u32 %v929, %v52
  %945 = vmatpush.bf16.msra.mxu0 0
  %946 = vmatpush.bf16.msra.mxu0 0
  %947 = vmatpush.bf16.msra.mxu0 0
  %948 = vmatpush.bf16.msra.mxu0 0
  %949 = vmatpush.bf16.msra.mxu0 0
  %950 = vmatpush.bf16.msra.mxu0 0
  %951 = vmatpush.bf16.msra.mxu0 0
  %952 = vmatpush.bf16.msra.mxu0 %v937
  %953 = vmatmul.bf16.gmra.mxu0 %v931
  %v954 = vpop.f32.mrf.mxu0
  %v955 = vadd.f32 0.0, %v954
  %v956 = vpop.f32.mrf.mxu0
  %v957 = vadd.f32 0.0, %v956
  %958 = vmatmul.bf16.gmra.mxu0 %v934
  %v959 = vpop.f32.mrf.mxu0
  %v960 = vadd.f32 0.0, %v959
  %v961 = vpop.f32.mrf.mxu0
  %v962 = vadd.f32 0.0, %v961
  %963 = vdwg.mxu0
  %964 = vmatpush.bf16.msra.mxu0 0
  %965 = vmatpush.bf16.msra.mxu0 0
  %966 = vmatpush.bf16.msra.mxu0 0
  %967 = vmatpush.bf16.msra.mxu0 0
  %968 = vmatpush.bf16.msra.mxu0 0
  %969 = vmatpush.bf16.msra.mxu0 0
  %970 = vmatpush.bf16.msra.mxu0 0
  %971 = vmatpush.bf16.msra.mxu0 %v940
  %972 = vmatmul.bf16.gmra.mxu0 %v931
  %v973 = vpop.f32.mrf.mxu0
  %v974 = vadd.f32 0.0, %v973
  %v975 = vpop.f32.mrf.mxu0
  %v976 = vadd.f32 0.0, %v975
  %977 = vmatmul.bf16.gmra.mxu0 %v934
  %v978 = vpop.f32.mrf.mxu0
  %v979 = vadd.f32 0.0, %v978
  %v980 = vpop.f32.mrf.mxu0
  %v981 = vadd.f32 0.0, %v980
  %982 = vdwg.mxu0
  %983 = vmatpush.bf16.msra.mxu0 0
  %984 = vmatpush.bf16.msra.mxu0 0
  %985 = vmatpush.bf16.msra.mxu0 0
  %986 = vmatpush.bf16.msra.mxu0 0
  %987 = vmatpush.bf16.msra.mxu0 0
  %988 = vmatpush.bf16.msra.mxu0 0
  %989 = vmatpush.bf16.msra.mxu0 0
  %990 = vmatpush.bf16.msra.mxu0 %v943
  %991 = vmatmul.bf16.gmra.mxu0 %v931
  %v992 = vpop.f32.mrf.mxu0
  %v993 = vadd.f32 0.0, %v992
  %v994 = vpop.f32.mrf.mxu0
  %v995 = vadd.f32 0.0, %v994
  %996 = vmatmul.bf16.gmra.mxu0 %v934
  %v997 = vpop.f32.mrf.mxu0
  %v998 = vadd.f32 0.0, %v997
  %v999 = vpop.f32.mrf.mxu0
  %v1000 = vadd.f32 0.0, %v999
  %1001 = vdwg.mxu0
  %v1002 = vadd.f32 %v880, %v955
  %v1003 = vadd.f32 %v881, %v974
  %v1004 = vadd.f32 %v882, %v993
  %v1005 = vadd.f32 %v883, %v957
  %v1006 = vadd.f32 %v884, %v976
  %v1007 = vadd.f32 %v885, %v995
  %v1008 = vadd.f32 %v886, %v960
  %v1009 = vadd.f32 %v887, %v979
  %v1010 = vadd.f32 %v888, %v998
  %v1011 = vadd.f32 %v889, %v962
  %v1012 = vadd.f32 %v890, %v981
  %v1013 = vadd.f32 %v891, %v1000
  %v1014 = vld [vmem:[%s2] sm:$0xff]
  %v1015 = vld [vmem:[%s2 + $0x8] sm:$0xff]
  %v1016 = vld [vmem:[%s2 + $0x10] sm:$0xff]
  %v1017 = vld [vmem:[%s2 + $0x18] sm:$0xff]
  %1019 = vset.pattern.permute.xlu0 0
  %1020 = vperm.xlu0 %1019, %v1014
  %v1021 = vpop.permute.xlu0 %1020
  %1024 = vset.pattern.permute.xlu0 0
  %1025 = vperm.xlu0 %1024, %v1015
  %v1026 = vpop.permute.xlu0 %1025
  %1029 = vset.pattern.permute.xlu0 0
  %1030 = vperm.xlu0 %1029, %v1016
  %v1031 = vpop.permute.xlu0 %1030
  %1034 = vset.pattern.permute.xlu0 0
  %1035 = vperm.xlu0 %1034, %v1017
  %v1036 = vpop.permute.xlu0 %1035
  %v1038 = vadd.f32 %v1002, %v1021
  %v1039 = vadd.f32 %v1003, %v1021
  %v1040 = vadd.f32 %v1004, %v1021
  %v1041 = vadd.f32 %v1005, %v1026
  %v1042 = vadd.f32 %v1006, %v1026
  %v1043 = vadd.f32 %v1007, %v1026
  %v1044 = vadd.f32 %v1008, %v1031
  %v1045 = vadd.f32 %v1009, %v1031
  %v1046 = vadd.f32 %v1010, %v1031
  %v1047 = vadd.f32 %v1011, %v1036
  %v1048 = vadd.f32 %v1012, %v1036
  %v1049 = vadd.f32 %v1013, %v1036
  %v1050 = vmax.f32 %v1038, 0.0
  %v1051 = vmax.f32 %v1039, 0.0
  %v1052 = vmax.f32 %v1040, 0.0
  %v1053 = vmax.f32 %v1041, 0.0
  %v1054 = vmax.f32 %v1042, 0.0
  %v1055 = vmax.f32 %v1043, 0.0
  %v1056 = vmax.f32 %v1044, 0.0
  %v1057 = vmax.f32 %v1045, 0.0
  %v1058 = vmax.f32 %v1046, 0.0
  %v1059 = vmax.f32 %v1047, 0.0
  %v1060 = vmax.f32 %v1048, 0.0
  %v1061 = vmax.f32 %v1049, 0.0
  %1062 = vst [vmem:[%s3] sm:$0xff] %v1050
  %1063 = vst [vmem:[%s3 + $0x8] sm:$0xff] %v1051
  %1064 = vst [vmem:[%s3 + $0x10] sm:$0xff] %v1052
  %1065 = vst [vmem:[%s3 + $0x18] sm:$0xff] %v1053
  %1066 = vst [vmem:[%s3 + $0x20] sm:$0xff] %v1054
  %1067 = vst [vmem:[%s3 + $0x28] sm:$0xff] %v1055
  %1068 = vst [vmem:[%s3 + $0x30] sm:$0xff] %v1056
  %1069 = vst [vmem:[%s3 + $0x38] sm:$0xff] %v1057
  %1070 = vst [vmem:[%s3 + $0x40] sm:$0xff] %v1058
  %1071 = vst [vmem:[%s3 + $0x48] sm:$0xff] %v1059
  %1072 = vst [vmem:[%s3 + $0x50] sm:$0xff] %v1060
  %1073 = vst [vmem:[%s3 + $0x58] sm:$0xff] %v1061
  // Predicated region
  $region14: #{_conv_nd.1} parent=0 // pred_check
    _
  $region15: #{_conv_nd.1} parent=0 // pred_check_branch
    %1075 = sbr.rel (0) target = $region17
  $region16: #{_conv_nd.1} parent=0 // pred_region
    _
  $region17: #{_conv_nd.1} parent=0 // pred_fallthru
    _
  // Predicated region
  $region18: #{_conv_nd.1} parent=0 // pred_check
    _
  $region19: #{_conv_nd.1} parent=0 // pred_check_branch
    %1077 = sbr.rel (0) target = $region21
  $region20: #{_conv_nd.1} parent=0 // pred_region
    _
  $region21: #{_conv_nd.1} parent=0 // pred_fallthru
    _

</llo_original>
